<compile_context>
chip_gen: v7x
topology: tpu7x:2x2x1
jax: 0.10.0
libtpu: 0.0.40
codegen_flags: <defaults>
</compile_context>

<pallas_src>
import jax
import jax.numpy as jnp
from jax.experimental import pallas as pl
from jax.experimental.pallas import tpu as pltpu


def _round_up(v, m):
    return ((v + m - 1) // m) * m


def _gcn_kernel(a_ref, xa_ref, w_ref, o_ref, acc_ref):
    k = pl.program_id(1)

    @pl.when(k == 0)
    def _():
        acc_ref[...] = jnp.zeros_like(acc_ref)

    # Aggregation: acc += A_tile @ x_aug_tile (contract over source nodes — big K).
    acc_ref[...] += jnp.dot(a_ref[...], xa_ref[...],
                            preferred_element_type=jnp.float32)

    @pl.when(k == pl.num_programs(1) - 1)
    def _():
        # Epilogue (once per row tile): apply W^T and bias in one small matmul.
        # W_aug = [[W^T], [b]] pairs with the ones-column appended to x_aug.
        o_ref[...] = jnp.dot(acc_ref[...], w_ref[...],
                             preferred_element_type=jnp.float32).astype(o_ref.dtype)


def directed_gcn_conv_pallas(x, edge_index, weight, bias, *,
                             alpha=1.0, beta=0.0, self_loops=True):
    """x: [N, Cin] float32, edge_index: [2, E] int32,
    weight: [Cout, Cin] (torch Linear layout), bias: [Cout]."""
    N, Cin = x.shape
    Cout = weight.shape[0]

    row, col = edge_index[0], edge_index[1]
    if self_loops:
        loop = jnp.arange(N, dtype=edge_index.dtype)
        row = jnp.concatenate([row, loop])
        col = jnp.concatenate([col, loop])

    # Degrees (float, like torch_geometric.utils.degree) and per-edge norm.
    in_deg = jnp.zeros((N,), jnp.float32).at[col].add(1.0)
    out_deg = jnp.zeros((N,), jnp.float32).at[row].add(1.0)
    norm = jnp.power(in_deg, -alpha)[col] * jnp.power(out_deg, -beta)[row]

    # Tile sizes: big enough for pipelining at scale, clamped for tiny graphs.
    tm = min(256, _round_up(N, 8))          # target-row tile (sublane axis)
    tk = min(1024, _round_up(N, 128))       # source-column tile (lane axis of A)
    n_rows = _round_up(N, tm)               # padded target nodes
    n_cols = _round_up(N, tk)               # padded source nodes
    cin_pad = _round_up(Cin + 1, 128)       # lane-dense augmented channels
    cout_pad = _round_up(Cout, 128)         # lane-dense output channels

    # Dense normalized adjacency (zero-padded): A[target, source] += norm.
    # TODO(synk): for large sparse graphs, replace this O(N^2) XLA scatter with
    # an in-kernel per-tile adjacency build from tile-bucketed edges via
    # PrefetchScalarGridSpec so HBM traffic scales with E, not N^2.
    A = jnp.zeros((n_rows, n_cols), jnp.float32).at[col, row].add(norm)

    # Augmented features [x | 1 | 0-pad]:
    #   (A @ [x|1]) @ [[W^T],[b]] = (A@x)@W^T + rowsum(A)[:,None]*b = A@(xW^T+b)
    x_aug = jnp.zeros((n_cols, cin_pad), jnp.float32)
    x_aug = x_aug.at[:N, :Cin].set(x.astype(jnp.float32))
    x_aug = x_aug.at[:N, Cin].set(1.0)

    w_aug = jnp.zeros((cin_pad, cout_pad), jnp.float32)
    w_aug = w_aug.at[:Cin, :Cout].set(weight.T.astype(jnp.float32))
    w_aug = w_aug.at[Cin, :Cout].set(bias.astype(jnp.float32))

    grid = (n_rows // tm, n_cols // tk)

    out_pad = pl.pallas_call(
        _gcn_kernel,
        out_shape=jax.ShapeDtypeStruct((n_rows, cout_pad), jnp.float32),
        grid_spec=pltpu.PrefetchScalarGridSpec(
            num_scalar_prefetch=0,
            grid=grid,
            in_specs=[
                pl.BlockSpec((tm, tk), lambda i, k: (i, k)),            # A tile
                pl.BlockSpec((tk, cin_pad), lambda i, k: (k, 0)),       # x_aug tile
                pl.BlockSpec((cin_pad, cout_pad), lambda i, k: (0, 0)),  # W_aug (resident)
            ],
            out_specs=pl.BlockSpec((tm, cout_pad), lambda i, k: (i, 0)),
            scratch_shapes=[pltpu.VMEM((tm, cin_pad), jnp.float32)],
        ),
        compiler_params=pltpu.CompilerParams(
            dimension_semantics=("parallel", "arbitrary")),
    )(A, x_aug, w_aug)

    return out_pad[:N, :Cout]


def single_layer_target_gcn_conv_encoder(x, edge_index, params, *,
                                         alpha=1.0, beta=0.0, self_loops=True):
    return directed_gcn_conv_pallas(x, edge_index, params["weight"], params["bias"],
                                    alpha=alpha, beta=beta, self_loops=self_loops)


def _reference(x, edge_index, weight, bias, *, alpha=1.0, beta=0.0, self_loops=True):
    # Pure-JAX reference (same math as the PyTorch module, no Pallas).
    N = x.shape[0]
    row, col = edge_index[0], edge_index[1]
    if self_loops:
        loop = jnp.arange(N, dtype=edge_index.dtype)
        row = jnp.concatenate([row, loop])
        col = jnp.concatenate([col, loop])
    h = x @ weight.T + bias
    in_deg = jnp.zeros((N,), jnp.float32).at[col].add(1.0)
    out_deg = jnp.zeros((N,), jnp.float32).at[row].add(1.0)
    norm = jnp.power(in_deg, -alpha)[col] * jnp.power(out_deg, -beta)[row]
    msgs = norm[:, None] * h[row]
    return jnp.zeros((N, h.shape[1]), jnp.float32).at[col].add(msgs)


if __name__ == "__main__":
    key = jax.random.PRNGKey(0)
    N, E = 16, 24
    in_channels, out_channels = 8, 32

    k_x, k_src, k_dst, k_w, k_b = jax.random.split(key, 5)
    x = jax.random.normal(k_x, (N, in_channels), jnp.float32)
    src = jax.random.randint(k_src, (E,), 0, N, jnp.int32)
    dst = jax.random.randint(k_dst, (E,), 0, N, jnp.int32)
    edge_index = jnp.stack([src, dst], axis=0)            # [2, E]

    # Deterministic Linear params (torch layout: weight [Cout, Cin], bias [Cout]).
    bound = 1.0 / (in_channels ** 0.5)
    weight = jax.random.uniform(k_w, (out_channels, in_channels), jnp.float32,
                                minval=-bound, maxval=bound)
    bias = jax.random.uniform(k_b, (out_channels,), jnp.float32,
                              minval=-bound, maxval=bound)
    params = {"weight": weight, "bias": bias}

    out = single_layer_target_gcn_conv_encoder(x, edge_index, params,
                                               alpha=1.0, beta=0.0, self_loops=True)
    out = jax.block_until_ready(out)

    ref = _reference(x, edge_index, weight, bias, alpha=1.0, beta=0.0, self_loops=True)
    assert out.shape == (N, out_channels)
    assert jnp.allclose(out, ref, atol=1e-4, rtol=1e-4), "mismatch vs reference"
    print("KERNEL_OK")
</pallas_src>

<mosaic_0001>
module attributes {stable_mosaic.version = 11 : i64} {
  func.func @_gcn_kernel(%arg0: i32, %arg1: i32, %arg2: memref<16x128xf32, #tpu.memory_space<vmem>>, %arg3: memref<128x128xf32, #tpu.memory_space<vmem>>, %arg4: memref<128x128xf32, #tpu.memory_space<vmem>>, %arg5: memref<16x128xf32, #tpu.memory_space<vmem>>, %arg6: memref<16x128xf32, #tpu.memory_space<vmem>>) attributes {dimension_semantics = [#tpu.dimension_semantics<parallel>, #tpu.dimension_semantics<arbitrary>], iteration_bounds = array<i64: 1, 1>, scalar_prefetch = 0 : i64, scratch_operands = 1 : i64, tpu.core_type = #tpu.core_type<tc>, window_params = [{transform_indices = @transform_0, window_bounds = array<i64: 16, 128>}, {transform_indices = @transform_1, window_bounds = array<i64: 128, 128>}, {pipeline_mode = #tpu.pipeline_mode<synchronous>, transform_indices = @transform_2, window_bounds = array<i64: 128, 128>}, {transform_indices = @transform_3, window_bounds = array<i64: 16, 128>}]} {
    %c0_i32 = arith.constant 0 : i32
    %0 = arith.cmpi eq, %arg1, %c0_i32 : i32
    %1 = arith.extui %0 : i1 to i32
    %c0_i32_0 = arith.constant 0 : i32
    %2 = arith.cmpi ne, %1, %c0_i32_0 : i32
    scf.if %2 {
      %cst_10 = arith.constant 0.000000e+00 : f32
      %12 = vector.broadcast %cst_10 : f32 to vector<16x128xf32>
      %c0_11 = arith.constant 0 : index
      %c0_12 = arith.constant 0 : index
      %13 = vector.load %arg6[%c0_11, %c0_12] : memref<16x128xf32, #tpu.memory_space<vmem>>, vector<16x128xf32>
      tpu.vector_store %arg6[%c0_11, %c0_12], %12 {strides = array<i32>} : memref<16x128xf32, #tpu.memory_space<vmem>>, vector<16x128xf32>,
    } else {
    }
    %c0 = arith.constant 0 : index
    %c0_1 = arith.constant 0 : index
    %3 = vector.load %arg6[%c0, %c0_1] : memref<16x128xf32, #tpu.memory_space<vmem>>, vector<16x128xf32>
    %c0_2 = arith.constant 0 : index
    %c0_3 = arith.constant 0 : index
    %4 = vector.load %arg2[%c0_2, %c0_3] : memref<16x128xf32, #tpu.memory_space<vmem>>, vector<16x128xf32>
    %c0_4 = arith.constant 0 : index
    %c0_5 = arith.constant 0 : index
    %5 = vector.load %arg3[%c0_4, %c0_5] : memref<128x128xf32, #tpu.memory_space<vmem>>, vector<128x128xf32>
    %cst = arith.constant dense<0.000000e+00> : vector<16x128xf32>
    %6 = tpu.matmul %4, %5, %cst {dimension_numbers = #tpu.dot_dimension_numbers<[1], [0], [0], [1], [0, 0, 1, 1], [], []>} : vector<16x128xf32>, vector<128x128xf32>, vector<16x128xf32> -> vector<16x128xf32>
    %7 = arith.addf %3, %6 : vector<16x128xf32>
    %c0_6 = arith.constant 0 : index
    %c0_7 = arith.constant 0 : index
    %8 = vector.load %arg6[%c0_6, %c0_7] : memref<16x128xf32, #tpu.memory_space<vmem>>, vector<16x128xf32>
    tpu.vector_store %arg6[%c0_6, %c0_7], %7 {strides = array<i32>} : memref<16x128xf32, #tpu.memory_space<vmem>>, vector<16x128xf32>,
    %c0_i32_8 = arith.constant 0 : i32
    %9 = arith.cmpi eq, %arg1, %c0_i32_8 : i32
    %10 = arith.extui %9 : i1 to i32
    %c0_i32_9 = arith.constant 0 : i32
    %11 = arith.cmpi ne, %10, %c0_i32_9 : i32
    scf.if %11 {
      %c0_10 = arith.constant 0 : index
      %c0_11 = arith.constant 0 : index
      %12 = vector.load %arg6[%c0_10, %c0_11] : memref<16x128xf32, #tpu.memory_space<vmem>>, vector<16x128xf32>
      %c0_12 = arith.constant 0 : index
      %c0_13 = arith.constant 0 : index
      %13 = vector.load %arg4[%c0_12, %c0_13] : memref<128x128xf32, #tpu.memory_space<vmem>>, vector<128x128xf32>
      %cst_14 = arith.constant dense<0.000000e+00> : vector<16x128xf32>
      %14 = tpu.matmul %12, %13, %cst_14 {dimension_numbers = #tpu.dot_dimension_numbers<[1], [0], [0], [1], [0, 0, 1, 1], [], []>} : vector<16x128xf32>, vector<128x128xf32>, vector<16x128xf32> -> vector<16x128xf32>
      %c0_15 = arith.constant 0 : index
      %c0_16 = arith.constant 0 : index
      %15 = vector.load %arg5[%c0_15, %c0_16] : memref<16x128xf32, #tpu.memory_space<vmem>>, vector<16x128xf32>
      tpu.vector_store %arg5[%c0_15, %c0_16], %14 {strides = array<i32>} : memref<16x128xf32, #tpu.memory_space<vmem>>, vector<16x128xf32>,
    } else {
    }
    return
  }
  func.func @transform_0(%arg0: i32, %arg1: i32) -> (i32, i32) {
    %c0_i32 = arith.constant 0 : i32
    return %arg0, %arg1 : i32, i32
  }
  func.func @transform_1(%arg0: i32, %arg1: i32) -> (i32, i32) {
    %c0_i32 = arith.constant 0 : i32
    %c0_i32_0 = arith.constant 0 : i32
    return %arg1, %c0_i32 : i32, i32
  }
  func.func @transform_2(%arg0: i32, %arg1: i32) -> (i32, i32) {
    %c0_i32 = arith.constant 0 : i32
    %c0_i32_0 = arith.constant 0 : i32
    %c0_i32_1 = arith.constant 0 : i32
    return %c0_i32, %c0_i32_0 : i32, i32
  }
  func.func @transform_3(%arg0: i32, %arg1: i32) -> (i32, i32) {
    %c0_i32 = arith.constant 0 : i32
    %c0_i32_0 = arith.constant 0 : i32
    return %arg0, %c0_i32 : i32, i32
  }
}

</mosaic_0001>

<llo_original>
// kernel: tpu_custom_call.1
$region0: #{tpu_custom_call.1}
  #allocation0 [shape = 'u32[]', space=smem, size = 0x4, offset = 0x4, fixed_abs, tag = 'smem constant byte address 0x4 - core index']
  #allocation1 [shape = 'u32[144,128]{1,0:T(1,128)}', space=vmem, size = 0x12000, scoped, tag = 'internal scratch']
  #allocation2 [shape = 'f32[16,128]{1,0:T(8,128)}', space=vmem, size = 0x2000, scoped, tag = 'scratch operand']
  %s0 = inlined_call_operand.hbm [shape: f32[16,128], index: 0, kind: input, shape index: {}]
  %s1 = inlined_call_operand.hbm [shape: f32[128,128], index: 1, kind: input, shape index: {}]
  %s2 = inlined_call_operand.hbm [shape: f32[128,128], index: 2, kind: input, shape index: {}]
  %s3 = inlined_call_operand.hbm [shape: f32[16,128], index: 3, kind: output, shape index: {}]
  %s4 = sld [smem:[#allocation0]]
  $region42: #{tpu_custom_call.1} parent=0
    _
  %s6 = ssub.s32 1, %s4
  %s7 = scalar_select 0, %s6, %s4
  $region1: #{tpu_custom_call.1} parent=0
    #allocation3 [shape = 'u8[8192]{0}', space=vmem, size = 0x2000, scoped, tag = 'input window, operand 0, single buffered']
    #allocation4 [shape = 's32[1]{0}', space=sflag, size = 0x4, scoped, tag = 'scoped memory for tpu_custom_call.1']
    #allocation5 [shape = 's32[1]{0}', space=sflag, size = 0x4, scoped, tag = 'scoped memory for tpu_custom_call.1']
    #allocation6 [shape = 'u8[65536]{0}', space=vmem, size = 0x10000, scoped, tag = 'input window, operand 1, single buffered']
    #allocation7 [shape = 's32[1]{0}', space=sflag, size = 0x4, scoped, tag = 'scoped memory for tpu_custom_call.1']
    #allocation8 [shape = 'u8[65536]{0}', space=vmem, size = 0x10000, scoped, tag = 'input window, operand 2, single buffered']
    #allocation9 [shape = 'u8[8192]{0}', space=vmem, size = 0x2000, scoped, tag = 'output window, operand 0, single buffered']
    %8 = vsyncpa [#allocation4], 0
    %9 = vsyncpa [#allocation7], 0
    %10 = vsyncpa [#allocation5], 0
    // Predicated region
    $region2: #{tpu_custom_call.1} parent=1 // pred_check
      _
    $region3: #{tpu_custom_call.1} parent=1 // pred_check_branch
      %12 = sbr.rel (0) target = $region5
    $region4: #{tpu_custom_call.1} parent=1 // pred_region
      %s14 = ssub.s32 256, 256
      %15 = vsyncadd [#allocation4], %s14
      %s16 = sshll.u32 [#allocation3], 4
      %s17 = int_to_ptr.vmem [resolvable:$true] %s16
      %22 = dma.hbm_to_vmem [thread:$0]  %s0, 256, %s17, [#allocation4], 128, 128, 8
    $region5: #{tpu_custom_call.1} parent=1 // pred_fallthru
      _
    // Predicated region
    $region6: #{tpu_custom_call.1} parent=1 // pred_check
      _
    $region7: #{tpu_custom_call.1} parent=1 // pred_check_branch
      %24 = sbr.rel (0) target = $region9
    $region8: #{tpu_custom_call.1} parent=1 // pred_region
      %s26 = ssub.s32 2048, 2048
      %27 = vsyncadd [#allocation7], %s26
      %s28 = sshll.u32 [#allocation6], 4
      %s29 = int_to_ptr.vmem [resolvable:$true] %s28
      %34 = dma.hbm_to_vmem [thread:$0]  %s1, 2048, %s29, [#allocation7], 128, 128, 8
    $region9: #{tpu_custom_call.1} parent=1 // pred_fallthru
      _
    // Predicated region
    $region10: #{tpu_custom_call.1} parent=1 // pred_check
      _
    $region11: #{tpu_custom_call.1} parent=1 // pred_check_branch
      %36 = sbr.rel (0) target = $region13
    $region12: #{tpu_custom_call.1} parent=1 // pred_region
      %s38 = ssub.s32 2048, 2048
      %39 = vsyncadd [#allocation7], %s38
      %s40 = sshll.u32 [#allocation8], 4
      %s41 = int_to_ptr.vmem [resolvable:$true] %s40
      %46 = dma.hbm_to_vmem [thread:$0]  %s2, 2048, %s41, [#allocation7], 128, 128, 8
    $region13: #{tpu_custom_call.1} parent=1 // pred_fallthru
      _
    // Predicated region
    $region14: #{tpu_custom_call.1} parent=1 // pred_check
      _
    $region15: #{tpu_custom_call.1} parent=1 // pred_check_branch
      %48 = sbr.rel (0) target = $region17
    $region16: #{tpu_custom_call.1} parent=1 // pred_region
      %49 = dma.done [#allocation4], 256
    $region17: #{tpu_custom_call.1} parent=1 // pred_fallthru
      _
    // Predicated region
    $region18: #{tpu_custom_call.1} parent=1 // pred_check
      _
    $region19: #{tpu_custom_call.1} parent=1 // pred_check_branch
      %51 = sbr.rel (0) target = $region21
    $region20: #{tpu_custom_call.1} parent=1 // pred_region
      %52 = dma.done [#allocation7], 2048
    $region21: #{tpu_custom_call.1} parent=1 // pred_fallthru
      _
    // Predicated region
    $region22: #{tpu_custom_call.1} parent=1 // pred_check
      _
    $region23: #{tpu_custom_call.1} parent=1 // pred_check_branch
      %54 = sbr.rel (0) target = $region25
    $region24: #{tpu_custom_call.1} parent=1 // pred_region
      %55 = dma.done [#allocation7], 2048
    $region25: #{tpu_custom_call.1} parent=1 // pred_fallthru
      _
    %p56 = scmp.eq.s32.totalorder 0, 0
    // Predicated region
    $region26: #{tpu_custom_call.1} parent=1 // pred_check
      %p57 = pneg %p56
    $region27: #{tpu_custom_call.1} parent=1 // pred_check_branch
      %59 = sbr.rel (%p57) target = $region29
    $region28: #{tpu_custom_call.1} parent=1 // pred_region
      %60 = vst [vmem:[#allocation2] sm:$0xff] 0.0
      %61 = vst [vmem:[#allocation2 + $0x8] sm:$0xff] 0.0
    $region29: #{tpu_custom_call.1} parent=1 // pred_fallthru
      _
    %v62 = vld [vmem:[#allocation2] sm:$0xff]
    %v63 = vld [vmem:[#allocation2 + $0x8] sm:$0xff]
    %v64 = vld [vmem:[#allocation3] sm:$0xff]
    %v65 = vld [vmem:[#allocation3 + $0x8] sm:$0xff]
    %v66 = vld [vmem:[#allocation6] sm:$0xff]
    %v67 = vld [vmem:[#allocation6 + $0x8] sm:$0xff]
    %v68 = vld [vmem:[#allocation6 + $0x10] sm:$0xff]
    %v69 = vld [vmem:[#allocation6 + $0x18] sm:$0xff]
    %v70 = vld [vmem:[#allocation6 + $0x20] sm:$0xff]
    %v71 = vld [vmem:[#allocation6 + $0x28] sm:$0xff]
    %v72 = vld [vmem:[#allocation6 + $0x30] sm:$0xff]
    %v73 = vld [vmem:[#allocation6 + $0x38] sm:$0xff]
    %v74 = vld [vmem:[#allocation6 + $0x40] sm:$0xff]
    %v75 = vld [vmem:[#allocation6 + $0x48] sm:$0xff]
    %v76 = vld [vmem:[#allocation6 + $0x50] sm:$0xff]
    %v77 = vld [vmem:[#allocation6 + $0x58] sm:$0xff]
    %v78 = vld [vmem:[#allocation6 + $0x60] sm:$0xff]
    %v79 = vld [vmem:[#allocation6 + $0x68] sm:$0xff]
    %v80 = vld [vmem:[#allocation6 + $0x70] sm:$0xff]
    %v81 = vld [vmem:[#allocation6 + $0x78] sm:$0xff]
    %82 = vmatprep.subr.mxu0 0.0
    %83 = vmatpush1.msra.mxu0 %v66
    %84 = vmatprep.subr.mxu0 0.0
    %85 = vmatpush1.msra.mxu0 %v67
    %86 = vmatprep.subr.mxu0 0.0
    %87 = vmatpush1.msra.mxu0 %v68
    %88 = vmatprep.subr.mxu0 0.0
    %89 = vmatpush1.msra.mxu0 %v69
    %90 = vmatprep.subr.mxu0 0.0
    %91 = vmatpush1.msra.mxu0 %v70
    %92 = vmatprep.subr.mxu0 0.0
    %93 = vmatpush1.msra.mxu0 %v71
    %94 = vmatprep.subr.mxu0 0.0
    %95 = vmatpush1.msra.mxu0 %v72
    %96 = vmatprep.subr.mxu0 0.0
    %97 = vmatpush1.msra.mxu0 %v73
    %98 = vmatprep.subr.mxu0 0.0
    %99 = vmatpush1.msra.mxu0 %v74
    %100 = vmatprep.subr.mxu0 0.0
    %101 = vmatpush1.msra.mxu0 %v75
    %102 = vmatprep.subr.mxu0 0.0
    %103 = vmatpush1.msra.mxu0 %v76
    %104 = vmatprep.subr.mxu0 0.0
    %105 = vmatpush1.msra.mxu0 %v77
    %106 = vmatprep.subr.mxu0 0.0
    %107 = vmatpush1.msra.mxu0 %v78
    %108 = vmatprep.subr.mxu0 0.0
    %109 = vmatpush1.msra.mxu0 %v79
    %110 = vmatprep.subr.mxu0 0.0
    %111 = vmatpush1.msra.mxu0 %v80
    %112 = vmatprep.subr.mxu0 0.0
    %113 = vmatpush1.msra.mxu0 %v81
    %114 = vmatprep.subr.mxu0 0.0
    %115 = vmatpush1.msra.mxu0 0.0
    %116 = vmatprep.subr.mxu0 0.0
    %117 = vmatpush1.msra.mxu0 0.0
    %118 = vmatprep.subr.mxu0 0.0
    %119 = vmatpush1.msra.mxu0 0.0
    %120 = vmatprep.subr.mxu0 0.0
    %121 = vmatpush1.msra.mxu0 0.0
    %122 = vmatprep.subr.mxu0 0.0
    %123 = vmatpush1.msra.mxu0 0.0
    %124 = vmatprep.subr.mxu0 0.0
    %125 = vmatpush1.msra.mxu0 0.0
    %126 = vmatprep.subr.mxu0 0.0
    %127 = vmatpush1.msra.mxu0 0.0
    %128 = vmatprep.subr.mxu0 0.0
    %129 = vmatpush1.msra.mxu0 0.0
    %130 = vmatprep.subr.mxu0 0.0
    %131 = vmatpush1.msra.mxu0 0.0
    %132 = vmatprep.subr.mxu0 0.0
    %133 = vmatpush1.msra.mxu0 0.0
    %134 = vmatprep.subr.mxu0 0.0
    %135 = vmatpush1.msra.mxu0 0.0
    %136 = vmatprep.subr.mxu0 0.0
    %137 = vmatpush1.msra.mxu0 0.0
    %138 = vmatprep.subr.mxu0 0.0
    %139 = vmatpush1.msra.mxu0 0.0
    %140 = vmatprep.subr.mxu0 0.0
    %141 = vmatpush1.msra.mxu0 0.0
    %142 = vmatprep.subr.mxu0 0.0
    %143 = vmatpush1.msra.mxu0 0.0
    %144 = vmatprep.subr.mxu0 0.0
    %145 = vmatpush1.msra.mxu0 0.0
    %146 = vmatprep.mubr.f32.mxu0 0.0
    %147 = vmatmul.mubr.f32.gmra.mrb[0].mxu0 %v64
    %v148 = vpop.f32.mrb[0].mxu0
    %v149 = vadd.f32 0.0, %v148
    %v150 = vpop.f32.mrb[0].mxu0
    %151 = vmatprep.mubr.f32.mxu0 0.0
    %152 = vmatmul.mubr.f32.gmra.mrb[0].mxu0 %v65
    %v153 = vpop.f32.mrb[0].mxu0
    %v154 = vadd.f32 0.0, %v153
    %v155 = vpop.f32.mrb[0].mxu0
    %156 = vdwg.mxu0
    %v157 = vadd.f32 %v62, %v149
    %v158 = vadd.f32 %v63, %v154
    %159 = vst [vmem:[#allocation2] sm:$0xff] %v157
    %160 = vst [vmem:[#allocation2 + $0x8] sm:$0xff] %v158
    // Predicated region
    $region30: #{tpu_custom_call.1} parent=1 // pred_check
      %p161 = pneg %p56
    $region31: #{tpu_custom_call.1} parent=1 // pred_check_branch
      %163 = sbr.rel (%p161) target = $region33
    $region32: #{tpu_custom_call.1} parent=1 // pred_region
      %v164 = vld [vmem:[#allocation2] sm:$0xff]
      %v165 = vld [vmem:[#allocation2 + $0x8] sm:$0xff]
      %v166 = vld [vmem:[#allocation8] sm:$0xff]
      %v167 = vld [vmem:[#allocation8 + $0x8] sm:$0xff]
      %v168 = vld [vmem:[#allocation8 + $0x10] sm:$0xff]
      %v169 = vld [vmem:[#allocation8 + $0x18] sm:$0xff]
      %v170 = vld [vmem:[#allocation8 + $0x20] sm:$0xff]
      %v171 = vld [vmem:[#allocation8 + $0x28] sm:$0xff]
      %v172 = vld [vmem:[#allocation8 + $0x30] sm:$0xff]
      %v173 = vld [vmem:[#allocation8 + $0x38] sm:$0xff]
      %v174 = vld [vmem:[#allocation8 + $0x40] sm:$0xff]
      %v175 = vld [vmem:[#allocation8 + $0x48] sm:$0xff]
      %v176 = vld [vmem:[#allocation8 + $0x50] sm:$0xff]
      %v177 = vld [vmem:[#allocation8 + $0x58] sm:$0xff]
      %v178 = vld [vmem:[#allocation8 + $0x60] sm:$0xff]
      %v179 = vld [vmem:[#allocation8 + $0x68] sm:$0xff]
      %v180 = vld [vmem:[#allocation8 + $0x70] sm:$0xff]
      %v181 = vld [vmem:[#allocation8 + $0x78] sm:$0xff]
      %182 = vmatprep.subr.mxu0 0.0
      %183 = vmatpush1.msra.mxu0 %v166
      %184 = vmatprep.subr.mxu0 0.0
      %185 = vmatpush1.msra.mxu0 %v167
      %186 = vmatprep.subr.mxu0 0.0
      %187 = vmatpush1.msra.mxu0 %v168
      %188 = vmatprep.subr.mxu0 0.0
      %189 = vmatpush1.msra.mxu0 %v169
      %190 = vmatprep.subr.mxu0 0.0
      %191 = vmatpush1.msra.mxu0 %v170
      %192 = vmatprep.subr.mxu0 0.0
      %193 = vmatpush1.msra.mxu0 %v171
      %194 = vmatprep.subr.mxu0 0.0
      %195 = vmatpush1.msra.mxu0 %v172
      %196 = vmatprep.subr.mxu0 0.0
      %197 = vmatpush1.msra.mxu0 %v173
      %198 = vmatprep.subr.mxu0 0.0
      %199 = vmatpush1.msra.mxu0 %v174
      %200 = vmatprep.subr.mxu0 0.0
      %201 = vmatpush1.msra.mxu0 %v175
      %202 = vmatprep.subr.mxu0 0.0
      %203 = vmatpush1.msra.mxu0 %v176
      %204 = vmatprep.subr.mxu0 0.0
      %205 = vmatpush1.msra.mxu0 %v177
      %206 = vmatprep.subr.mxu0 0.0
      %207 = vmatpush1.msra.mxu0 %v178
      %208 = vmatprep.subr.mxu0 0.0
      %209 = vmatpush1.msra.mxu0 %v179
      %210 = vmatprep.subr.mxu0 0.0
      %211 = vmatpush1.msra.mxu0 %v180
      %212 = vmatprep.subr.mxu0 0.0
      %213 = vmatpush1.msra.mxu0 %v181
      %214 = vmatprep.subr.mxu0 0.0
      %215 = vmatpush1.msra.mxu0 0.0
      %216 = vmatprep.subr.mxu0 0.0
      %217 = vmatpush1.msra.mxu0 0.0
      %218 = vmatprep.subr.mxu0 0.0
      %219 = vmatpush1.msra.mxu0 0.0
      %220 = vmatprep.subr.mxu0 0.0
      %221 = vmatpush1.msra.mxu0 0.0
      %222 = vmatprep.subr.mxu0 0.0
      %223 = vmatpush1.msra.mxu0 0.0
      %224 = vmatprep.subr.mxu0 0.0
      %225 = vmatpush1.msra.mxu0 0.0
      %226 = vmatprep.subr.mxu0 0.0
      %227 = vmatpush1.msra.mxu0 0.0
      %228 = vmatprep.subr.mxu0 0.0
      %229 = vmatpush1.msra.mxu0 0.0
      %230 = vmatprep.subr.mxu0 0.0
      %231 = vmatpush1.msra.mxu0 0.0
      %232 = vmatprep.subr.mxu0 0.0
      %233 = vmatpush1.msra.mxu0 0.0
      %234 = vmatprep.subr.mxu0 0.0
      %235 = vmatpush1.msra.mxu0 0.0
      %236 = vmatprep.subr.mxu0 0.0
      %237 = vmatpush1.msra.mxu0 0.0
      %238 = vmatprep.subr.mxu0 0.0
      %239 = vmatpush1.msra.mxu0 0.0
      %240 = vmatprep.subr.mxu0 0.0
      %241 = vmatpush1.msra.mxu0 0.0
      %242 = vmatprep.subr.mxu0 0.0
      %243 = vmatpush1.msra.mxu0 0.0
      %244 = vmatprep.subr.mxu0 0.0
      %245 = vmatpush1.msra.mxu0 0.0
      %246 = vmatprep.mubr.f32.mxu0 0.0
      %247 = vmatmul.mubr.f32.gmra.mrb[0].mxu0 %v164
      %v248 = vpop.f32.mrb[0].mxu0
      %v249 = vadd.f32 0.0, %v248
      %v250 = vpop.f32.mrb[0].mxu0
      %251 = vmatprep.mubr.f32.mxu0 0.0
      %252 = vmatmul.mubr.f32.gmra.mrb[0].mxu0 %v165
      %v253 = vpop.f32.mrb[0].mxu0
      %v254 = vadd.f32 0.0, %v253
      %v255 = vpop.f32.mrb[0].mxu0
      %256 = vdwg.mxu0
      %257 = vst [vmem:[#allocation9] sm:$0xff] %v249
      %258 = vst [vmem:[#allocation9 + $0x8] sm:$0xff] %v254
    $region33: #{tpu_custom_call.1} parent=1 // pred_fallthru
      _
    // Predicated region
    $region34: #{tpu_custom_call.1} parent=1 // pred_check
      _
    $region35: #{tpu_custom_call.1} parent=1 // pred_check_branch
      %260 = sbr.rel (0) target = $region37
    $region36: #{tpu_custom_call.1} parent=1 // pred_region
      %s262 = ssub.s32 256, 256
      %263 = vsyncadd [#allocation5], %s262
      %s264 = sshll.u32 [#allocation9], 4
      %s265 = int_to_ptr.vmem [resolvable:$true] %s264
      %270 = dma.vmem_to_hbm [thread:$0]  %s265, 256, %s3, [#allocation5], 128, 128, 8
    $region37: #{tpu_custom_call.1} parent=1 // pred_fallthru
      _
    // Predicated region
    $region38: #{tpu_custom_call.1} parent=1 // pred_check
      _
    $region39: #{tpu_custom_call.1} parent=1 // pred_check_branch
      %272 = sbr.rel (0) target = $region41
    $region40: #{tpu_custom_call.1} parent=1 // pred_region
      %273 = dma.done [#allocation5], 256
    $region41: #{tpu_custom_call.1} parent=1 // pred_fallthru
      _
    %274 = vsyncpa [#allocation4], 1
    %275 = vsyncpa [#allocation7], 1
    %276 = vsyncpa [#allocation5], 1

</llo_original>
